<compile_context>
chip_gen: v7x
topology: tpu7x:2x2x1
jax: 0.10.0
libtpu: 0.0.40
codegen_flags: <defaults>
</compile_context>

<pallas_src>
import functools

import jax
import jax.numpy as jnp
from jax.experimental import pallas as pl
from jax.experimental.pallas import tpu as pltpu

# 3x3 taps in (ky, kx) row-major order -> spatial offsets (dy, dx) in {-1,0,1}.
_TAPS = tuple((dy, dx) for dy in (-1, 0, 1) for dx in (-1, 0, 1))

_BT_MAX = 32  # batch-tile cap; resident VMEM ~ BT * 280 KiB -> ~9 MiB at BT=32


def _fused_cnn_kernel(masks_ref, x_ref, w1_ref, b1_ref, w2_ref, b2_ref,
                      o_ref, patches_ref, *, H, W, bt):
    """One batch tile, both conv layers fused; h1 never round-trips to HBM.

    masks:   (9, N)      f32 0/1 tap-validity, pre-tiled over the batch tile
    x:       (1, N)      flattened pixels, N = bt*H*W on the lane axis
    w1:      (C1, 9)     layer-1 taps            b1: (C1, 1)
    w2:      (C2, 9*C1)  layer-2 im2col weights  b2: (C2, 1)
    o:       (C2, N)     layer-2 ReLU output, lane-dense
    patches: (9*C1, N)   VMEM scratch holding the layer-2 im2col matrix
    """
    N = bt * H * W
    C1 = w1_ref.shape[0]

    def tap(img, j):
        dy, dx = _TAPS[j]
        off = dy * W + dx
        if off == 0:
            return img                           # center tap: no shift, all valid
        shifted = pltpu.roll(img, shift=(-off) % N, axis=1)
        return shifted * masks_ref[j:j + 1, :]   # zero out-of-image / cross-image lanes

    # ---- layer 1: Conv2d(1->C1, 3x3, pad=1) + ReLU on the VPU, whole tile ----
    x = x_ref[...]                                # (1, N)
    w1 = w1_ref[...]                              # (C1, 9)
    acc = w1[:, 0:1] * tap(x, 0)                  # (C1, N)
    for j in range(1, 9):
        acc = acc + w1[:, j:j + 1] * tap(x, j)
    h1 = jnp.maximum(acc + b1_ref[...], 0.0)      # (C1, N), stays in VMEM

    # ---- layer 2: im2col written straight into VMEM scratch (no concat) ----
    for j in range(9):
        patches_ref[j * C1:(j + 1) * C1, :] = tap(h1, j)

    # ---- one batched MXU matmul for the whole tile + fused bias/ReLU ----
    h2 = jnp.dot(w2_ref[...], patches_ref[...],
                 preferred_element_type=jnp.float32)       # (C2, N)
    o_ref[...] = jnp.maximum(h2 + b2_ref[...], 0.0)        # unmasked lane-dense store


def _make_masks(H, W, bt):
    """(9, bt*H*W) f32 validity masks (1.0 inside image, 0.0 for halo padding)."""
    HW = H * W
    pos = jnp.arange(HW, dtype=jnp.int32)
    col = pos % W
    row = pos // W
    rows = []
    for dy, dx in _TAPS:
        rows.append((col + dx >= 0) & (col + dx < W) &
                    (row + dy >= 0) & (row + dy < H))
    m = jnp.stack(rows, axis=0).astype(jnp.float32)        # (9, HW)
    return jnp.tile(m, (1, bt))                            # (9, bt*HW)


@functools.partial(jax.jit, static_argnames=("H", "W"))
def _fused_forward(x_flat, w1, b1, w2, b2, *, H, W):
    """x_flat: (B, H*W) f32; torch-shaped params -> (B, 32*H*W) in flatten order."""
    B, HW = x_flat.shape
    C1, C2 = w1.shape[0], w2.shape[0]
    assert HW == H * W

    # Params -> flat 2-D blocks matching the in-kernel im2col tap order.
    w1_r = w1[:, 0, :, :].reshape(C1, 9).astype(jnp.float32)                        # (C1, 9)
    b1_c = b1.reshape(C1, 1).astype(jnp.float32)
    w2_r = jnp.transpose(w2, (0, 2, 3, 1)).reshape(C2, 9 * C1).astype(jnp.float32)  # (C2, 144)
    b2_c = b2.reshape(C2, 1).astype(jnp.float32)

    # Batch tile: VMEM-budgeted cap, and >=2 grid steps whenever B >= 2 so the
    # "parallel" axis can shard across v7x's two TensorCores.
    bt = max(1, min(_BT_MAX, (B + 1) // 2))
    n_tiles = -(-B // bt)
    Bp = n_tiles * bt
    if Bp != B:
        x_flat = jnp.pad(x_flat, ((0, Bp - B), (0, 0)))
    N = bt * HW

    # Fold batch onto the lane axis in HBM (free reshape) -> lane-dense blocks.
    x_lanes = x_flat.astype(jnp.float32).reshape(1, Bp * HW)
    masks = _make_masks(H, W, bt)

    kernel = functools.partial(_fused_cnn_kernel, H=H, W=W, bt=bt)
    out = pl.pallas_call(
        kernel,
        out_shape=jax.ShapeDtypeStruct((C2, Bp * HW), jnp.float32),
        grid_spec=pltpu.PrefetchScalarGridSpec(
            num_scalar_prefetch=0,
            grid=(n_tiles,),
            in_specs=[
                pl.BlockSpec((9, N), lambda i: (0, 0)),         # masks (resident)
                pl.BlockSpec((1, N), lambda i: (0, i)),         # input tile
                pl.BlockSpec((C1, 9), lambda i: (0, 0)),        # w1
                pl.BlockSpec((C1, 1), lambda i: (0, 0)),        # b1
                pl.BlockSpec((C2, 9 * C1), lambda i: (0, 0)),   # w2
                pl.BlockSpec((C2, 1), lambda i: (0, 0)),        # b2
            ],
            out_specs=pl.BlockSpec((C2, N), lambda i: (0, i)),
            scratch_shapes=[pltpu.VMEM((9 * C1, N), jnp.float32)],
        ),
        compiler_params=pltpu.CompilerParams(
            dimension_semantics=("parallel",),
            vmem_limit_bytes=32 * 1024 * 1024,
        ),
    )(masks, x_lanes, w1_r, b1_c, w2_r, b2_c)

    # (C2, Bp*HW) -> (B, C2*HW): one small wrapper-side transpose so every
    # in-kernel store stays an unmasked lane-dense vst.
    out = out.reshape(C2, Bp, HW)[:, :B, :]
    return jnp.transpose(out, (1, 0, 2)).reshape(B, C2 * HW)


class FeatureExtractorPallas:
    """JAX/Pallas port of the PyTorch FeatureExtractor."""

    def __init__(self, obs_shape, key):
        H, W = obs_shape
        self.H, self.W = H, W
        k1, k2, k3, k4 = jax.random.split(key, 4)
        # Deterministic synthetic init (PyTorch Conv2d shapes: (Cout, Cin, 3, 3)).
        self.w1 = jax.random.normal(k1, (16, 1, 3, 3), jnp.float32) * 0.1
        self.b1 = jax.random.normal(k2, (16,), jnp.float32) * 0.1
        self.w2 = jax.random.normal(k3, (32, 16, 3, 3), jnp.float32) * 0.05
        self.b2 = jax.random.normal(k4, (32,), jnp.float32) * 0.05
        self.feature_size = 32 * H * W

    def __call__(self, observations):
        # observations: (B, H, W) or (B, 1, H, W), NCHW convention.
        if observations.ndim == 3:
            observations = observations[:, None, :, :]
        B = observations.shape[0]
        x_flat = observations.astype(jnp.float32).reshape(B, self.H * self.W)
        return _fused_forward(x_flat, self.w1, self.b1, self.w2, self.b2,
                              H=self.H, W=self.W)


def _reference(observations, fe):
    """Pure-JAX reference (lax.conv_general_dilated) for correctness check."""
    if observations.ndim == 3:
        observations = observations[:, None, :, :]
    x = observations.astype(jnp.float32)

    def conv(x, w, b):
        y = jax.lax.conv_general_dilated(
            x, w, window_strides=(1, 1), padding="SAME",
            dimension_numbers=("NCHW", "OIHW", "NCHW"),
            precision=jax.lax.Precision.HIGHEST)
        return jnp.maximum(y + b[None, :, None, None], 0.0)

    h1 = conv(x, fe.w1, fe.b1)
    h2 = conv(h1, fe.w2, fe.b2)
    return h2.reshape(h2.shape[0], -1)


if __name__ == "__main__":
    key = jax.random.PRNGKey(0)
    k_obs, k_params = jax.random.split(key)

    B, H, W = 2, 16, 16
    observations = jax.random.normal(k_obs, (B, H, W), jnp.float32)

    fe = FeatureExtractorPallas((H, W), k_params)
    out = jax.block_until_ready(fe(observations))

    assert out.shape == (B, fe.feature_size), out.shape

    ref = jax.block_until_ready(_reference(observations, fe))
    max_err = float(jnp.max(jnp.abs(out - ref)))
    assert jnp.allclose(out, ref, atol=1e-3, rtol=1e-3), max_err

    print("KERNEL_OK")
</pallas_src>

<mosaic_0001>
module attributes {stable_mosaic.version = 11 : i64} {
  func.func @_fused_cnn_kernel(%arg0: i32, %arg1: memref<9x256xf32, #tpu.memory_space<vmem>>, %arg2: memref<1x256xf32, #tpu.memory_space<vmem>>, %arg3: memref<16x9xf32, #tpu.memory_space<vmem>>, %arg4: memref<16x1xf32, #tpu.memory_space<vmem>>, %arg5: memref<32x144xf32, #tpu.memory_space<vmem>>, %arg6: memref<32x1xf32, #tpu.memory_space<vmem>>, %arg7: memref<32x256xf32, #tpu.memory_space<vmem>>, %arg8: memref<144x256xf32, #tpu.memory_space<vmem>>) attributes {dimension_semantics = [#tpu.dimension_semantics<parallel>], iteration_bounds = array<i64: 2>, scalar_prefetch = 0 : i64, scratch_operands = 1 : i64, tpu.core_type = #tpu.core_type<tc>, window_params = [{pipeline_mode = #tpu.pipeline_mode<synchronous>, transform_indices = @transform_0, window_bounds = array<i64: 9, 256>}, {transform_indices = @transform_1, window_bounds = array<i64: 1, 256>}, {pipeline_mode = #tpu.pipeline_mode<synchronous>, transform_indices = @transform_2, window_bounds = array<i64: 16, 9>}, {pipeline_mode = #tpu.pipeline_mode<synchronous>, transform_indices = @transform_3, window_bounds = array<i64: 16, 1>}, {pipeline_mode = #tpu.pipeline_mode<synchronous>, transform_indices = @transform_4, window_bounds = array<i64: 32, 144>}, {pipeline_mode = #tpu.pipeline_mode<synchronous>, transform_indices = @transform_5, window_bounds = array<i64: 32, 1>}, {transform_indices = @transform_6, window_bounds = array<i64: 32, 256>}]} {
    %c0 = arith.constant 0 : index
    %c0_0 = arith.constant 0 : index
    %0 = vector.load %arg2[%c0, %c0_0] : memref<1x256xf32, #tpu.memory_space<vmem>>, vector<1x256xf32>
    %c0_1 = arith.constant 0 : index
    %c0_2 = arith.constant 0 : index
    %1 = vector.load %arg3[%c0_1, %c0_2] : memref<16x9xf32, #tpu.memory_space<vmem>>, vector<16x9xf32>
    %2 = vector.extract_strided_slice %1 {offsets = [0, 0], sizes = [16, 1], strides = [1, 1]} : vector<16x9xf32> to vector<16x1xf32>
    %c17_i32 = arith.constant 17 : i32
    %3 = tpu.dynamic_rotate %0 by %c17_i32 dim 1 : vector<1x256xf32>, i32 -> vector<1x256xf32>
    %c0_3 = arith.constant 0 : index
    %c0_4 = arith.constant 0 : index
    %4 = vector.load %arg1[%c0_3, %c0_4] : memref<9x256xf32, #tpu.memory_space<vmem>>, vector<1x256xf32>
    %5 = arith.mulf %3, %4 : vector<1x256xf32>
    %6 = vector.broadcast %2 : vector<16x1xf32> to vector<16x256xf32>
    %7 = vector.broadcast %5 : vector<1x256xf32> to vector<16x256xf32>
    %8 = arith.mulf %6, %7 : vector<16x256xf32>
    %9 = vector.extract_strided_slice %1 {offsets = [0, 1], sizes = [16, 1], strides = [1, 1]} : vector<16x9xf32> to vector<16x1xf32>
    %c16_i32 = arith.constant 16 : i32
    %10 = tpu.dynamic_rotate %0 by %c16_i32 dim 1 : vector<1x256xf32>, i32 -> vector<1x256xf32>
    %c1 = arith.constant 1 : index
    %c0_5 = arith.constant 0 : index
    %11 = vector.load %arg1[%c1, %c0_5] : memref<9x256xf32, #tpu.memory_space<vmem>>, vector<1x256xf32>
    %12 = arith.mulf %10, %11 : vector<1x256xf32>
    %13 = vector.broadcast %9 : vector<16x1xf32> to vector<16x256xf32>
    %14 = vector.broadcast %12 : vector<1x256xf32> to vector<16x256xf32>
    %15 = arith.mulf %13, %14 : vector<16x256xf32>
    %16 = arith.addf %8, %15 : vector<16x256xf32>
    %17 = vector.extract_strided_slice %1 {offsets = [0, 2], sizes = [16, 1], strides = [1, 1]} : vector<16x9xf32> to vector<16x1xf32>
    %c15_i32 = arith.constant 15 : i32
    %18 = tpu.dynamic_rotate %0 by %c15_i32 dim 1 : vector<1x256xf32>, i32 -> vector<1x256xf32>
    %c2 = arith.constant 2 : index
    %c0_6 = arith.constant 0 : index
    %19 = vector.load %arg1[%c2, %c0_6] : memref<9x256xf32, #tpu.memory_space<vmem>>, vector<1x256xf32>
    %20 = arith.mulf %18, %19 : vector<1x256xf32>
    %21 = vector.broadcast %17 : vector<16x1xf32> to vector<16x256xf32>
    %22 = vector.broadcast %20 : vector<1x256xf32> to vector<16x256xf32>
    %23 = arith.mulf %21, %22 : vector<16x256xf32>
    %24 = arith.addf %16, %23 : vector<16x256xf32>
    %25 = vector.extract_strided_slice %1 {offsets = [0, 3], sizes = [16, 1], strides = [1, 1]} : vector<16x9xf32> to vector<16x1xf32>
    %c1_i32 = arith.constant 1 : i32
    %26 = tpu.dynamic_rotate %0 by %c1_i32 dim 1 : vector<1x256xf32>, i32 -> vector<1x256xf32>
    %c3 = arith.constant 3 : index
    %c0_7 = arith.constant 0 : index
    %27 = vector.load %arg1[%c3, %c0_7] : memref<9x256xf32, #tpu.memory_space<vmem>>, vector<1x256xf32>
    %28 = arith.mulf %26, %27 : vector<1x256xf32>
    %29 = vector.broadcast %25 : vector<16x1xf32> to vector<16x256xf32>
    %30 = vector.broadcast %28 : vector<1x256xf32> to vector<16x256xf32>
    %31 = arith.mulf %29, %30 : vector<16x256xf32>
    %32 = arith.addf %24, %31 : vector<16x256xf32>
    %33 = vector.extract_strided_slice %1 {offsets = [0, 4], sizes = [16, 1], strides = [1, 1]} : vector<16x9xf32> to vector<16x1xf32>
    %34 = vector.broadcast %33 : vector<16x1xf32> to vector<16x256xf32>
    %35 = vector.broadcast %0 : vector<1x256xf32> to vector<16x256xf32>
    %36 = arith.mulf %34, %35 : vector<16x256xf32>
    %37 = arith.addf %32, %36 : vector<16x256xf32>
    %38 = vector.extract_strided_slice %1 {offsets = [0, 5], sizes = [16, 1], strides = [1, 1]} : vector<16x9xf32> to vector<16x1xf32>
    %c255_i32 = arith.constant 255 : i32
    %39 = tpu.dynamic_rotate %0 by %c255_i32 dim 1 : vector<1x256xf32>, i32 -> vector<1x256xf32>
    %c5 = arith.constant 5 : index
    %c0_8 = arith.constant 0 : index
    %40 = vector.load %arg1[%c5, %c0_8] : memref<9x256xf32, #tpu.memory_space<vmem>>, vector<1x256xf32>
    %41 = arith.mulf %39, %40 : vector<1x256xf32>
    %42 = vector.broadcast %38 : vector<16x1xf32> to vector<16x256xf32>
    %43 = vector.broadcast %41 : vector<1x256xf32> to vector<16x256xf32>
    %44 = arith.mulf %42, %43 : vector<16x256xf32>
    %45 = arith.addf %37, %44 : vector<16x256xf32>
    %46 = vector.extract_strided_slice %1 {offsets = [0, 6], sizes = [16, 1], strides = [1, 1]} : vector<16x9xf32> to vector<16x1xf32>
    %c241_i32 = arith.constant 241 : i32
    %47 = tpu.dynamic_rotate %0 by %c241_i32 dim 1 : vector<1x256xf32>, i32 -> vector<1x256xf32>
    %c6 = arith.constant 6 : index
    %c0_9 = arith.constant 0 : index
    %48 = vector.load %arg1[%c6, %c0_9] : memref<9x256xf32, #tpu.memory_space<vmem>>, vector<1x256xf32>
    %49 = arith.mulf %47, %48 : vector<1x256xf32>
    %50 = vector.broadcast %46 : vector<16x1xf32> to vector<16x256xf32>
    %51 = vector.broadcast %49 : vector<1x256xf32> to vector<16x256xf32>
    %52 = arith.mulf %50, %51 : vector<16x256xf32>
    %53 = arith.addf %45, %52 : vector<16x256xf32>
    %54 = vector.extract_strided_slice %1 {offsets = [0, 7], sizes = [16, 1], strides = [1, 1]} : vector<16x9xf32> to vector<16x1xf32>
    %c240_i32 = arith.constant 240 : i32
    %55 = tpu.dynamic_rotate %0 by %c240_i32 dim 1 : vector<1x256xf32>, i32 -> vector<1x256xf32>
    %c7 = arith.constant 7 : index
    %c0_10 = arith.constant 0 : index
    %56 = vector.load %arg1[%c7, %c0_10] : memref<9x256xf32, #tpu.memory_space<vmem>>, vector<1x256xf32>
    %57 = arith.mulf %55, %56 : vector<1x256xf32>
    %58 = vector.broadcast %54 : vector<16x1xf32> to vector<16x256xf32>
    %59 = vector.broadcast %57 : vector<1x256xf32> to vector<16x256xf32>
    %60 = arith.mulf %58, %59 : vector<16x256xf32>
    %61 = arith.addf %53, %60 : vector<16x256xf32>
    %62 = vector.extract_strided_slice %1 {offsets = [0, 8], sizes = [16, 1], strides = [1, 1]} : vector<16x9xf32> to vector<16x1xf32>
    %c239_i32 = arith.constant 239 : i32
    %63 = tpu.dynamic_rotate %0 by %c239_i32 dim 1 : vector<1x256xf32>, i32 -> vector<1x256xf32>
    %c8 = arith.constant 8 : index
    %c0_11 = arith.constant 0 : index
    %64 = vector.load %arg1[%c8, %c0_11] : memref<9x256xf32, #tpu.memory_space<vmem>>, vector<1x256xf32>
    %65 = arith.mulf %63, %64 : vector<1x256xf32>
    %66 = vector.broadcast %62 : vector<16x1xf32> to vector<16x256xf32>
    %67 = vector.broadcast %65 : vector<1x256xf32> to vector<16x256xf32>
    %68 = arith.mulf %66, %67 : vector<16x256xf32>
    %69 = arith.addf %61, %68 : vector<16x256xf32>
    %c0_12 = arith.constant 0 : index
    %c0_13 = arith.constant 0 : index
    %70 = vector.load %arg4[%c0_12, %c0_13] : memref<16x1xf32, #tpu.memory_space<vmem>>, vector<16x1xf32>
    %71 = vector.broadcast %70 : vector<16x1xf32> to vector<16x256xf32>
    %72 = arith.addf %69, %71 : vector<16x256xf32>
    %cst = arith.constant 0.000000e+00 : f32
    %73 = vector.broadcast %cst : f32 to vector<16x256xf32>
    %74 = arith.maximumf %72, %73 : vector<16x256xf32>
    %c17_i32_14 = arith.constant 17 : i32
    %75 = tpu.dynamic_rotate %74 by %c17_i32_14 dim 1 : vector<16x256xf32>, i32 -> vector<16x256xf32>
    %c0_15 = arith.constant 0 : index
    %c0_16 = arith.constant 0 : index
    %76 = vector.load %arg1[%c0_15, %c0_16] : memref<9x256xf32, #tpu.memory_space<vmem>>, vector<1x256xf32>
    %77 = vector.broadcast %76 : vector<1x256xf32> to vector<16x256xf32>
    %78 = arith.mulf %75, %77 : vector<16x256xf32>
    %c0_17 = arith.constant 0 : index
    %c0_18 = arith.constant 0 : index
    %79 = vector.load %arg8[%c0_17, %c0_18] : memref<144x256xf32, #tpu.memory_space<vmem>>, vector<16x256xf32>
    tpu.vector_store %arg8[%c0_17, %c0_18], %78 {strides = array<i32>} : memref<144x256xf32, #tpu.memory_space<vmem>>, vector<16x256xf32>,
    %c16_i32_19 = arith.constant 16 : i32
    %80 = tpu.dynamic_rotate %74 by %c16_i32_19 dim 1 : vector<16x256xf32>, i32 -> vector<16x256xf32>
    %c1_20 = arith.constant 1 : index
    %c0_21 = arith.constant 0 : index
    %81 = vector.load %arg1[%c1_20, %c0_21] : memref<9x256xf32, #tpu.memory_space<vmem>>, vector<1x256xf32>
    %82 = vector.broadcast %81 : vector<1x256xf32> to vector<16x256xf32>
    %83 = arith.mulf %80, %82 : vector<16x256xf32>
    %c16 = arith.constant 16 : index
    %c0_22 = arith.constant 0 : index
    %84 = vector.load %arg8[%c16, %c0_22] : memref<144x256xf32, #tpu.memory_space<vmem>>, vector<16x256xf32>
    tpu.vector_store %arg8[%c16, %c0_22], %83 {strides = array<i32>} : memref<144x256xf32, #tpu.memory_space<vmem>>, vector<16x256xf32>,
    %c15_i32_23 = arith.constant 15 : i32
    %85 = tpu.dynamic_rotate %74 by %c15_i32_23 dim 1 : vector<16x256xf32>, i32 -> vector<16x256xf32>
    %c2_24 = arith.constant 2 : index
    %c0_25 = arith.constant 0 : index
    %86 = vector.load %arg1[%c2_24, %c0_25] : memref<9x256xf32, #tpu.memory_space<vmem>>, vector<1x256xf32>
    %87 = vector.broadcast %86 : vector<1x256xf32> to vector<16x256xf32>
    %88 = arith.mulf %85, %87 : vector<16x256xf32>
    %c32 = arith.constant 32 : index
    %c0_26 = arith.constant 0 : index
    %89 = vector.load %arg8[%c32, %c0_26] : memref<144x256xf32, #tpu.memory_space<vmem>>, vector<16x256xf32>
    tpu.vector_store %arg8[%c32, %c0_26], %88 {strides = array<i32>} : memref<144x256xf32, #tpu.memory_space<vmem>>, vector<16x256xf32>,
    %c1_i32_27 = arith.constant 1 : i32
    %90 = tpu.dynamic_rotate %74 by %c1_i32_27 dim 1 : vector<16x256xf32>, i32 -> vector<16x256xf32>
    %c3_28 = arith.constant 3 : index
    %c0_29 = arith.constant 0 : index
    %91 = vector.load %arg1[%c3_28, %c0_29] : memref<9x256xf32, #tpu.memory_space<vmem>>, vector<1x256xf32>
    %92 = vector.broadcast %91 : vector<1x256xf32> to vector<16x256xf32>
    %93 = arith.mulf %90, %92 : vector<16x256xf32>
    %c48 = arith.constant 48 : index
    %c0_30 = arith.constant 0 : index
    %94 = vector.load %arg8[%c48, %c0_30] : memref<144x256xf32, #tpu.memory_space<vmem>>, vector<16x256xf32>
    tpu.vector_store %arg8[%c48, %c0_30], %93 {strides = array<i32>} : memref<144x256xf32, #tpu.memory_space<vmem>>, vector<16x256xf32>,
    %c64 = arith.constant 64 : index
    %c0_31 = arith.constant 0 : index
    %95 = vector.load %arg8[%c64, %c0_31] : memref<144x256xf32, #tpu.memory_space<vmem>>, vector<16x256xf32>
    tpu.vector_store %arg8[%c64, %c0_31], %74 {strides = array<i32>} : memref<144x256xf32, #tpu.memory_space<vmem>>, vector<16x256xf32>,
    %c255_i32_32 = arith.constant 255 : i32
    %96 = tpu.dynamic_rotate %74 by %c255_i32_32 dim 1 : vector<16x256xf32>, i32 -> vector<16x256xf32>
    %c5_33 = arith.constant 5 : index
    %c0_34 = arith.constant 0 : index
    %97 = vector.load %arg1[%c5_33, %c0_34] : memref<9x256xf32, #tpu.memory_space<vmem>>, vector<1x256xf32>
    %98 = vector.broadcast %97 : vector<1x256xf32> to vector<16x256xf32>
    %99 = arith.mulf %96, %98 : vector<16x256xf32>
    %c80 = arith.constant 80 : index
    %c0_35 = arith.constant 0 : index
    %100 = vector.load %arg8[%c80, %c0_35] : memref<144x256xf32, #tpu.memory_space<vmem>>, vector<16x256xf32>
    tpu.vector_store %arg8[%c80, %c0_35], %99 {strides = array<i32>} : memref<144x256xf32, #tpu.memory_space<vmem>>, vector<16x256xf32>,
    %c241_i32_36 = arith.constant 241 : i32
    %101 = tpu.dynamic_rotate %74 by %c241_i32_36 dim 1 : vector<16x256xf32>, i32 -> vector<16x256xf32>
    %c6_37 = arith.constant 6 : index
    %c0_38 = arith.constant 0 : index
    %102 = vector.load %arg1[%c6_37, %c0_38] : memref<9x256xf32, #tpu.memory_space<vmem>>, vector<1x256xf32>
    %103 = vector.broadcast %102 : vector<1x256xf32> to vector<16x256xf32>
    %104 = arith.mulf %101, %103 : vector<16x256xf32>
    %c96 = arith.constant 96 : index
    %c0_39 = arith.constant 0 : index
    %105 = vector.load %arg8[%c96, %c0_39] : memref<144x256xf32, #tpu.memory_space<vmem>>, vector<16x256xf32>
    tpu.vector_store %arg8[%c96, %c0_39], %104 {strides = array<i32>} : memref<144x256xf32, #tpu.memory_space<vmem>>, vector<16x256xf32>,
    %c240_i32_40 = arith.constant 240 : i32
    %106 = tpu.dynamic_rotate %74 by %c240_i32_40 dim 1 : vector<16x256xf32>, i32 -> vector<16x256xf32>
    %c7_41 = arith.constant 7 : index
    %c0_42 = arith.constant 0 : index
    %107 = vector.load %arg1[%c7_41, %c0_42] : memref<9x256xf32, #tpu.memory_space<vmem>>, vector<1x256xf32>
    %108 = vector.broadcast %107 : vector<1x256xf32> to vector<16x256xf32>
    %109 = arith.mulf %106, %108 : vector<16x256xf32>
    %c112 = arith.constant 112 : index
    %c0_43 = arith.constant 0 : index
    %110 = vector.load %arg8[%c112, %c0_43] : memref<144x256xf32, #tpu.memory_space<vmem>>, vector<16x256xf32>
    tpu.vector_store %arg8[%c112, %c0_43], %109 {strides = array<i32>} : memref<144x256xf32, #tpu.memory_space<vmem>>, vector<16x256xf32>,
    %c239_i32_44 = arith.constant 239 : i32
    %111 = tpu.dynamic_rotate %74 by %c239_i32_44 dim 1 : vector<16x256xf32>, i32 -> vector<16x256xf32>
    %c8_45 = arith.constant 8 : index
    %c0_46 = arith.constant 0 : index
    %112 = vector.load %arg1[%c8_45, %c0_46] : memref<9x256xf32, #tpu.memory_space<vmem>>, vector<1x256xf32>
    %113 = vector.broadcast %112 : vector<1x256xf32> to vector<16x256xf32>
    %114 = arith.mulf %111, %113 : vector<16x256xf32>
    %c128 = arith.constant 128 : index
    %c0_47 = arith.constant 0 : index
    %115 = vector.load %arg8[%c128, %c0_47] : memref<144x256xf32, #tpu.memory_space<vmem>>, vector<16x256xf32>
    tpu.vector_store %arg8[%c128, %c0_47], %114 {strides = array<i32>} : memref<144x256xf32, #tpu.memory_space<vmem>>, vector<16x256xf32>,
    %c0_48 = arith.constant 0 : index
    %c0_49 = arith.constant 0 : index
    %116 = vector.load %arg5[%c0_48, %c0_49] : memref<32x144xf32, #tpu.memory_space<vmem>>, vector<32x144xf32>
    %c0_50 = arith.constant 0 : index
    %c0_51 = arith.constant 0 : index
    %117 = vector.load %arg8[%c0_50, %c0_51] : memref<144x256xf32, #tpu.memory_space<vmem>>, vector<144x256xf32>
    %cst_52 = arith.constant dense<0.000000e+00> : vector<32x256xf32>
    %118 = tpu.matmul %116, %117, %cst_52 {dimension_numbers = #tpu.dot_dimension_numbers<[1], [0], [0], [1], [0, 0, 1, 1], [], []>} : vector<32x144xf32>, vector<144x256xf32>, vector<32x256xf32> -> vector<32x256xf32>
    %c0_53 = arith.constant 0 : index
    %c0_54 = arith.constant 0 : index
    %119 = vector.load %arg6[%c0_53, %c0_54] : memref<32x1xf32, #tpu.memory_space<vmem>>, vector<32x1xf32>
    %120 = vector.broadcast %119 : vector<32x1xf32> to vector<32x256xf32>
    %121 = arith.addf %118, %120 : vector<32x256xf32>
    %cst_55 = arith.constant 0.000000e+00 : f32
    %122 = vector.broadcast %cst_55 : f32 to vector<32x256xf32>
    %123 = arith.maximumf %121, %122 : vector<32x256xf32>
    %c0_56 = arith.constant 0 : index
    %c0_57 = arith.constant 0 : index
    %124 = vector.load %arg7[%c0_56, %c0_57] : memref<32x256xf32, #tpu.memory_space<vmem>>, vector<32x256xf32>
    tpu.vector_store %arg7[%c0_56, %c0_57], %123 {strides = array<i32>} : memref<32x256xf32, #tpu.memory_space<vmem>>, vector<32x256xf32>,
    return
  }
  func.func @transform_0(%arg0: i32) -> (i32, i32) {
    %c0_i32 = arith.constant 0 : i32
    %c0_i32_0 = arith.constant 0 : i32
    %c0_i32_1 = arith.constant 0 : i32
    return %c0_i32, %c0_i32_0 : i32, i32
  }
  func.func @transform_1(%arg0: i32) -> (i32, i32) {
    %c0_i32 = arith.constant 0 : i32
    %c0_i32_0 = arith.constant 0 : i32
    return %c0_i32, %arg0 : i32, i32
  }
  func.func @transform_2(%arg0: i32) -> (i32, i32) {
    %c0_i32 = arith.constant 0 : i32
    %c0_i32_0 = arith.constant 0 : i32
    %c0_i32_1 = arith.constant 0 : i32
    return %c0_i32, %c0_i32_0 : i32, i32
  }
  func.func @transform_3(%arg0: i32) -> (i32, i32) {
    %c0_i32 = arith.constant 0 : i32
    %c0_i32_0 = arith.constant 0 : i32
    %c0_i32_1 = arith.constant 0 : i32
    return %c0_i32, %c0_i32_0 : i32, i32
  }
  func.func @transform_4(%arg0: i32) -> (i32, i32) {
    %c0_i32 = arith.constant 0 : i32
    %c0_i32_0 = arith.constant 0 : i32
    %c0_i32_1 = arith.constant 0 : i32
    return %c0_i32, %c0_i32_0 : i32, i32
  }
  func.func @transform_5(%arg0: i32) -> (i32, i32) {
    %c0_i32 = arith.constant 0 : i32
    %c0_i32_0 = arith.constant 0 : i32
    %c0_i32_1 = arith.constant 0 : i32
    return %c0_i32, %c0_i32_0 : i32, i32
  }
  func.func @transform_6(%arg0: i32) -> (i32, i32) {
    %c0_i32 = arith.constant 0 : i32
    %c0_i32_0 = arith.constant 0 : i32
    return %c0_i32, %arg0 : i32, i32
  }
}

</mosaic_0001>

<llo_original>
// kernel: squeeze.1
$region0: #{squeeze.1}
  %s0 = inlined_call_operand.vmem [shape: f32[16,3,3], index: 0, kind: input, shape index: {}]
  %s1 = inlined_call_operand.vmem [shape: f32[16,9], index: 1, kind: output, shape index: {}]
  $region1: #{squeeze.1} parent=0
    #allocation0 [shape = 'u8[12288]{0}', space=vmem, size = 0x3000, scoped, tag = 'scoped mem for input reshape']
    %s3 = sshllo.u32 0, 4
    %s4 = smul.addr 4, 2
    %s5 = scalar_lea.vmem %s0, %s4
    %v6 = vld [vmem:[%s5] sm:%s3]
    %s7 = scalar_lea.vmem [#allocation0], 16
    %8 = vst [vmem:[%s7] sm:%s3] %v6
    %s9 = scalar_lea.vmem %s0, 4
    %v10 = vld [vmem:[%s9] sm:%s3]
    %s11 = scalar_lea.vmem [#allocation0], 8
    %12 = vst [vmem:[%s11] sm:%s3] %v10
    %v13 = vld [vmem:[%s0] sm:%s3]
    %14 = vst [vmem:[#allocation0] sm:%s3] %v13
    %v15 = vld [vmem:[#allocation0] sm:$0x7]
    %vm16 = vcmask 130048
    %17 = vst.msk [vmem:[%s1] sm:$0x7] %vm16, %v15
    %s18 = scalar_lea.vmem [#allocation0], 8
    %v19 = vld [vmem:[%s18] sm:$0x7]
    %vm20 = vcmask 130048
    %s21 = scalar_lea.vmem %s1, 3
    %22 = vst.msk [vmem:[%s21] sm:$0x7] %vm20, %v19
    %s23 = scalar_lea.vmem [#allocation0], 16
    %v24 = vld [vmem:[%s23] sm:$0x7]
    %vm25 = vcmask 130048
    %s26 = scalar_lea.vmem %s1, 6
    %27 = vst.msk [vmem:[%s26] sm:$0x7] %vm25, %v24

// kernel: _fused_forward.1
$region0: #{_fused_forward.1}
  #allocation0 [shape = 'u32[]', space=smem, size = 0x4, offset = 0x4, fixed_abs, tag = 'smem constant byte address 0x4 - core index']
  #allocation1 [shape = 'u32[144,128]{1,0:T(1,128)}', space=vmem, size = 0x12000, scoped, tag = 'internal scratch']
  #allocation2 [shape = 'f32[144,256]{1,0:T(8,128)}', space=vmem, size = 0x24000, scoped, tag = 'scratch operand']
  %s0 = inlined_call_operand.vmem [shape: f32[9,256], index: 0, kind: input, shape index: {}]
  %s1 = inlined_call_operand.vmem [shape: f32[1,512], index: 1, kind: input, shape index: {}]
  %s2 = inlined_call_operand.vmem [shape: f32[16,9], index: 2, kind: input, shape index: {}]
  %s3 = inlined_call_operand.vmem [shape: f32[16,1], index: 3, kind: input, shape index: {}]
  %s4 = inlined_call_operand.vmem [shape: f32[32,144], index: 4, kind: input, shape index: {}]
  %s5 = inlined_call_operand.vmem [shape: f32[32,1], index: 5, kind: input, shape index: {}]
  %s6 = inlined_call_operand.vmem [shape: f32[32,512], index: 6, kind: output, shape index: {}]
  %s7 = sld [smem:[#allocation0]]
  $region76: #{_fused_forward.1} parent=0
    _
  %s9 = ssub.s32 1, %s7
  %s10 = scalar_select 0, %s9, %s7
  $region1: #{_fused_forward.1} parent=0
    #allocation3 [shape = 'u8[65536]{0}', space=vmem, size = 0x10000, scoped, tag = 'output window, operand 0']
    loop: start=0, step=1, limit=4
    $region2: #{_fused_forward.1} parent=1 // loop_pre_header
      _
    $region3: #{_fused_forward.1} parent=1 // loop_header
      %s12 = sphi 0, %s16
      %p13 = scmp.ge.s32.totalorder %s12, 4
      %s20 = sphi 0, %s20
      %s22 = sphi 0, %s20
      %s23 = sphi 0, %s22
      %s37 = sphi 0, %s23
      %s43 = sphi 0, %s45
      %s46 = sphi 0, %s43
      %s47 = sphi 0, %s46
      %s63 = sphi 0, %s47
      %s67 = sphi 0, %s67
      %s69 = sphi 0, %s67
      %s70 = sphi 0, %s69
      %s84 = sphi 0, %s70
      %s88 = sphi 0, %s88
      %s90 = sphi 0, %s88
      %s91 = sphi 0, %s90
      %s105 = sphi 0, %s91
      %s109 = sphi 0, %s109
      %s111 = sphi 0, %s109
      %s112 = sphi 0, %s111
      %s126 = sphi 0, %s112
      %s130 = sphi 0, %s130
      %s132 = sphi 0, %s130
      %s133 = sphi 0, %s132
      %s147 = sphi 0, %s133
      %s153 = sphi 0, %s155
      %s156 = sphi 0, %s153
      %s157 = sphi 0, %s156
      %s173 = sphi 0, %s157
    $region4: #{_fused_forward.1} parent=1 // loop_header_branch
      %15 = sbr.rel (%p13) target = $region8
    $region5: #{_fused_forward.1} parent=1 // loop_body
      %s17 = ssub.s32 %s12, 1
      %s18 = ssub.s32 %s12, 2
      %s19 = sadd.s32 %s12, 1
      %s21 = sadd.s32 %s20, 1
      %p24 = scmp.eq.s32.totalorder %s12, 1
      %p25 = scmp.ne.s32.totalorder %s20, %s22
      %p26 = scmp.eq.s32.totalorder %s12, 0
      %p27 = por %p25, %p26
      %p28 = scmp.ne.s32.totalorder %s20, %s22
      %p29 = scmp.eq.s32.totalorder %s17, 1
      %p30 = por %p28, %p29
      %p31 = scmp.ne.s32.totalorder %s22, %s23
      %p32 = scmp.eq.s32.totalorder %s17, 0
      %p33 = por %p31, %p32
      %p34 = scmp.ne.s32.totalorder %s22, %s23
      %p35 = scmp.eq.s32.totalorder %s18, 1
      %p36 = por %p34, %p35
      %p38 = scmp.ne.s32.totalorder %s23, %s37
      %p39 = scmp.eq.s32.totalorder %s18, 0
      %p40 = por %p38, %p39
      %s41 = ssub.s32 %s12, %s19
      %p42 = scmp.eq.s32.totalorder %s41, 0
      %s44 = sadd.s32 %s43, 1
      %s45 = scalar_select %p42, %s43, %s44
      %p48 = pneg %p42
      %p49 = scmp.eq.s32.totalorder %s12, 1
      %p50 = por %p48, %p49
      %p51 = scmp.ne.s32.totalorder %s43, %s46
      %p52 = scmp.eq.s32.totalorder %s12, 0
      %p53 = por %p51, %p52
      %p54 = scmp.ne.s32.totalorder %s43, %s46
      %p55 = scmp.eq.s32.totalorder %s17, 1
      %p56 = por %p54, %p55
      %p57 = scmp.ne.s32.totalorder %s46, %s47
      %p58 = scmp.eq.s32.totalorder %s17, 0
      %p59 = por %p57, %p58
      %p60 = scmp.ne.s32.totalorder %s46, %s47
      %p61 = scmp.eq.s32.totalorder %s18, 1
      %p62 = por %p60, %p61
      %p64 = scmp.ne.s32.totalorder %s47, %s63
      %p65 = scmp.eq.s32.totalorder %s18, 0
      %p66 = por %p64, %p65
      %s68 = sadd.s32 %s67, 1
      %p71 = scmp.eq.s32.totalorder %s12, 1
      %p72 = scmp.ne.s32.totalorder %s67, %s69
      %p73 = scmp.eq.s32.totalorder %s12, 0
      %p74 = por %p72, %p73
      %p75 = scmp.ne.s32.totalorder %s67, %s69
      %p76 = scmp.eq.s32.totalorder %s17, 1
      %p77 = por %p75, %p76
      %p78 = scmp.ne.s32.totalorder %s69, %s70
      %p79 = scmp.eq.s32.totalorder %s17, 0
      %p80 = por %p78, %p79
      %p81 = scmp.ne.s32.totalorder %s69, %s70
      %p82 = scmp.eq.s32.totalorder %s18, 1
      %p83 = por %p81, %p82
      %p85 = scmp.ne.s32.totalorder %s70, %s84
      %p86 = scmp.eq.s32.totalorder %s18, 0
      %p87 = por %p85, %p86
      %s89 = sadd.s32 %s88, 1
      %p92 = scmp.eq.s32.totalorder %s12, 1
      %p93 = scmp.ne.s32.totalorder %s88, %s90
      %p94 = scmp.eq.s32.totalorder %s12, 0
      %p95 = por %p93, %p94
      %p96 = scmp.ne.s32.totalorder %s88, %s90
      %p97 = scmp.eq.s32.totalorder %s17, 1
      %p98 = por %p96, %p97
      %p99 = scmp.ne.s32.totalorder %s90, %s91
      %p100 = scmp.eq.s32.totalorder %s17, 0
      %p101 = por %p99, %p100
      %p102 = scmp.ne.s32.totalorder %s90, %s91
      %p103 = scmp.eq.s32.totalorder %s18, 1
      %p104 = por %p102, %p103
      %p106 = scmp.ne.s32.totalorder %s91, %s105
      %p107 = scmp.eq.s32.totalorder %s18, 0
      %p108 = por %p106, %p107
      %s110 = sadd.s32 %s109, 1
      %p113 = scmp.eq.s32.totalorder %s12, 1
      %p114 = scmp.ne.s32.totalorder %s109, %s111
      %p115 = scmp.eq.s32.totalorder %s12, 0
      %p116 = por %p114, %p115
      %p117 = scmp.ne.s32.totalorder %s109, %s111
      %p118 = scmp.eq.s32.totalorder %s17, 1
      %p119 = por %p117, %p118
      %p120 = scmp.ne.s32.totalorder %s111, %s112
      %p121 = scmp.eq.s32.totalorder %s17, 0
      %p122 = por %p120, %p121
      %p123 = scmp.ne.s32.totalorder %s111, %s112
      %p124 = scmp.eq.s32.totalorder %s18, 1
      %p125 = por %p123, %p124
      %p127 = scmp.ne.s32.totalorder %s112, %s126
      %p128 = scmp.eq.s32.totalorder %s18, 0
      %p129 = por %p127, %p128
      %s131 = sadd.s32 %s130, 1
      %p134 = scmp.eq.s32.totalorder %s12, 1
      %p135 = scmp.ne.s32.totalorder %s130, %s132
      %p136 = scmp.eq.s32.totalorder %s12, 0
      %p137 = por %p135, %p136
      %p138 = scmp.ne.s32.totalorder %s130, %s132
      %p139 = scmp.eq.s32.totalorder %s17, 1
      %p140 = por %p138, %p139
      %p141 = scmp.ne.s32.totalorder %s132, %s133
      %p142 = scmp.eq.s32.totalorder %s17, 0
      %p143 = por %p141, %p142
      %p144 = scmp.ne.s32.totalorder %s132, %s133
      %p145 = scmp.eq.s32.totalorder %s18, 1
      %p146 = por %p144, %p145
      %p148 = scmp.ne.s32.totalorder %s133, %s147
      %p149 = scmp.eq.s32.totalorder %s18, 0
      %p150 = por %p148, %p149
      %s151 = ssub.s32 %s12, %s19
      %p152 = scmp.eq.s32.totalorder %s151, 0
      %s154 = sadd.s32 %s153, 1
      %s155 = scalar_select %p152, %s153, %s154
      %p158 = pneg %p152
      %p159 = scmp.eq.s32.totalorder %s12, 1
      %p160 = por %p158, %p159
      %p161 = scmp.ne.s32.totalorder %s153, %s156
      %p162 = scmp.eq.s32.totalorder %s12, 0
      %p163 = por %p161, %p162
      %p164 = scmp.ne.s32.totalorder %s153, %s156
      %p165 = scmp.eq.s32.totalorder %s17, 1
      %p166 = por %p164, %p165
      %p167 = scmp.ne.s32.totalorder %s156, %s157
      %p168 = scmp.eq.s32.totalorder %s17, 0
      %p169 = por %p167, %p168
      %p170 = scmp.ne.s32.totalorder %s156, %s157
      %p171 = scmp.eq.s32.totalorder %s18, 1
      %p172 = por %p170, %p171
      %p174 = scmp.ne.s32.totalorder %s157, %s173
      %p175 = scmp.eq.s32.totalorder %s18, 0
      %p176 = por %p174, %p175
      %p177 = scmp.le.s32.totalorder 1, %s12
      %p178 = scmp.lt.s32.totalorder %s12, 3
      %p179 = pnand %p177, %p178
      %p180 = pneg %p179
      // Predicated region
      $region9: #{_fused_forward.1} parent=5 // pred_check
        _
      $region10: #{_fused_forward.1} parent=5 // pred_check_branch
        %182 = sbr.rel (%p179) target = $region12
      $region11: #{_fused_forward.1} parent=5 // pred_region
        %s183 = ssub.s32 %s12, 1
        // Predicated region
        $region13: #{_fused_forward.1} parent=11 // pred_check
          %p184 = pneg %p33
        $region14: #{_fused_forward.1} parent=11 // pred_check_branch
          %186 = sbr.rel (%p184) target = $region16
        $region15: #{_fused_forward.1} parent=11 // pred_region
          _
        $region16: #{_fused_forward.1} parent=11 // pred_fallthru
          _
        // Predicated region
        $region17: #{_fused_forward.1} parent=11 // pred_check
          %p187 = pneg %p80
        $region18: #{_fused_forward.1} parent=11 // pred_check_branch
          %189 = sbr.rel (%p187) target = $region20
        $region19: #{_fused_forward.1} parent=11 // pred_region
          _
        $region20: #{_fused_forward.1} parent=11 // pred_fallthru
          _
        // Predicated region
        $region21: #{_fused_forward.1} parent=11 // pred_check
          %p190 = pneg %p101
        $region22: #{_fused_forward.1} parent=11 // pred_check_branch
          %192 = sbr.rel (%p190) target = $region24
        $region23: #{_fused_forward.1} parent=11 // pred_region
          _
        $region24: #{_fused_forward.1} parent=11 // pred_fallthru
          _
        // Predicated region
        $region25: #{_fused_forward.1} parent=11 // pred_check
          %p193 = pneg %p122
        $region26: #{_fused_forward.1} parent=11 // pred_check_branch
          %195 = sbr.rel (%p193) target = $region28
        $region27: #{_fused_forward.1} parent=11 // pred_region
          _
        $region28: #{_fused_forward.1} parent=11 // pred_fallthru
          _
        // Predicated region
        $region29: #{_fused_forward.1} parent=11 // pred_check
          %p196 = pneg %p143
        $region30: #{_fused_forward.1} parent=11 // pred_check_branch
          %198 = sbr.rel (%p196) target = $region32
        $region31: #{_fused_forward.1} parent=11 // pred_region
          _
        $region32: #{_fused_forward.1} parent=11 // pred_fallthru
          _
      $region12: #{_fused_forward.1} parent=5 // pred_fallthru
        _
      %p199 = scmp.lt.s32.totalorder %s12, 2
      // Predicated region
      $region33: #{_fused_forward.1} parent=5 // pred_check
        %p200 = pneg %p199
      $region34: #{_fused_forward.1} parent=5 // pred_check_branch
        %202 = sbr.rel (%p200) target = $region36
      $region35: #{_fused_forward.1} parent=5 // pred_region
        // Predicated region
        $region37: #{_fused_forward.1} parent=35 // pred_check
          %p203 = pneg %p53
        $region38: #{_fused_forward.1} parent=35 // pred_check_branch
          %205 = sbr.rel (%p203) target = $region40
        $region39: #{_fused_forward.1} parent=35 // pred_region
          %s206 = smul.u32 2, %s12
          %p207 = scmp.lt.s32.totalorder %s206, 3
          %s208 = scalar_select %p207, %s206, 3
          %s209 = scalar_lea.vmem %s1, %s208
          %s210 = smul.u32 2, %s12
        $region40: #{_fused_forward.1} parent=35 // pred_fallthru
          _
      $region36: #{_fused_forward.1} parent=5 // pred_fallthru
        _
      %p211 = scmp.le.s32.totalorder 1, %s12
      %p212 = scmp.lt.s32.totalorder %s12, 3
      %p213 = pnand %p211, %p212
      %p214 = pneg %p213
      // Predicated region
      $region41: #{_fused_forward.1} parent=5 // pred_check
        _
      $region42: #{_fused_forward.1} parent=5 // pred_check_branch
        %216 = sbr.rel (%p213) target = $region44
      $region43: #{_fused_forward.1} parent=5 // pred_region
        %s217 = ssub.s32 %s12, 1
        %p218 = pneg %p33
        %p219 = pneg %p30
        %s220 = smul.u32 2, %s17
        %p221 = scmp.lt.s32.totalorder %s220, 3
        %s222 = scalar_select %p221, %s220, 3
        %s223 = scalar_lea.vmem %s1, %s222
        %p224 = pneg %p59
        %p225 = pneg %p56
        %p226 = pneg %p80
        %p227 = pneg %p77
        %p228 = pneg %p101
        %p229 = pneg %p98
        %p230 = pneg %p122
        %p231 = pneg %p119
        %p232 = pneg %p143
        %p233 = pneg %p140
        %p234 = pneg %p169
        %p235 = pneg %p166
        %s236 = sand.u32 %s156, 1
        %s237 = sand.u32 %s156, 1
        %s238 = smul.addr %s237, 64
        %s239 = scalar_lea.vmem [#allocation3], %s238
        %s240 = smul.u32 2, %s17
        %p241 = scmp.lt.s32.totalorder %s240, 3
        %s242 = scalar_select %p241, %s240, 3
        %s243 = scalar_lea.vmem %s1, %s242
        %s244 = smul.u32 2, %s17
        %s245 = smul.u32 2, %s17
        %v246 = vld [vmem:[%s243] sm:$0x3]
        %v247 = vld [vmem:[%s2] sm:$0xff]
        %v248 = vld [vmem:[%s2 + $0x8] sm:$0xff]
        %v250 = vlaneseq
        %v251 = vshrl.u32 %v250, 7
        %v252 = vsub.s32 0, %v251
        %v253 = vrot.slane %v246, %v252
        %v254 = vlaneseq
        %v255 = vshrl.u32 %v254, 7
        %v256 = vsub.s32 1, %v255
        %v257 = vrot.slane %v246, %v256
        %260 = vrot.lane.b32.xlu0 %v253, 17
        %v261 = vpop.permute.xlu0 %260
        %262 = vrot.lane.b32.xlu0 %v257, 17
        %v263 = vpop.permute.xlu0 %262
        %v264 = vlaneseq
        %v265 = vand.u32 %v264, 127
        %vm266 = vcmp.lt.s32.totalorder %v265, 17
        %v267 = vsel %vm266, %v261, %v263
        %v268 = vsel %vm266, %v263, %v261
        %v269 = vld [vmem:[%s0] ss:$8 sm:$0x3]
        %v271 = vlaneseq
        %v272 = vshrl.u32 %v271, 7
        %v273 = vsub.s32 0, %v272
        %v274 = vrot.slane %v269, %v273
        %v275 = vlaneseq
        %v276 = vshrl.u32 %v275, 7
        %v277 = vsub.s32 1, %v276
        %v278 = vrot.slane %v269, %v277
        %v281 = vmul.f32 %v268, %v274
        %v282 = vmul.f32 %v267, %v278
        %284 = vset.pattern.permute.xlu0 0
        %285 = vperm.xlu0 %284, %v247
        %v286 = vpop.permute.xlu0 %285
        %289 = vset.pattern.permute.xlu0 0
        %290 = vperm.xlu0 %289, %v248
        %v291 = vpop.permute.xlu0 %290
        %v293 = vlaneseq
        %v294 = vshrl.u32 %v293, 7
        %v295 = vsub.s32 0, %v294
        %v296 = vrot.slane %v281, %v295
        %v297 = vlaneseq
        %v298 = vshrl.u32 %v297, 7
        %v299 = vsub.s32 0, %v298
        %v300 = vrot.slane %v282, %v299
        %v301 = vmul.f32 %v286, %v296
        %v302 = vmul.f32 %v286, %v300
        %v303 = vmul.f32 %v291, %v296
        %v304 = vmul.f32 %v291, %v300
        %305 = vrot.lane.b32.xlu0 %v253, 16
        %v306 = vpop.permute.xlu0 %305
        %307 = vrot.lane.b32.xlu0 %v257, 16
        %v308 = vpop.permute.xlu0 %307
        %vm309 = vcmp.lt.s32.totalorder %v265, 16
        %v310 = vsel %vm309, %v306, %v308
        %v311 = vsel %vm309, %v308, %v306
        %s312 = scalar_lea.vmem %s0, 1
        %v313 = vld [vmem:[%s312] ss:$8 sm:$0x3]
        %v315 = vlaneseq
        %v316 = vshrl.u32 %v315, 7
        %v317 = vsub.s32 0, %v316
        %v318 = vrot.slane %v313, %v317
        %v319 = vlaneseq
        %v320 = vshrl.u32 %v319, 7
        %v321 = vsub.s32 1, %v320
        %v322 = vrot.slane %v313, %v321
        %v325 = vmul.f32 %v311, %v318
        %v326 = vmul.f32 %v310, %v322
        %327 = vset.pattern.permute.xlu0 1
        %328 = vperm.xlu0 %327, %v247
        %v329 = vpop.permute.xlu0 %328
        %331 = vset.pattern.permute.xlu0 1
        %332 = vperm.xlu0 %331, %v248
        %v333 = vpop.permute.xlu0 %332
        %v335 = vlaneseq
        %v336 = vshrl.u32 %v335, 7
        %v337 = vsub.s32 0, %v336
        %v338 = vrot.slane %v325, %v337
        %v339 = vlaneseq
        %v340 = vshrl.u32 %v339, 7
        %v341 = vsub.s32 0, %v340
        %v342 = vrot.slane %v326, %v341
        %v343 = vmul.f32 %v329, %v338
        %v344 = vmul.f32 %v329, %v342
        %v345 = vmul.f32 %v333, %v338
        %v346 = vmul.f32 %v333, %v342
        %v347 = vadd.f32 %v301, %v343
        %v348 = vadd.f32 %v302, %v344
        %v349 = vadd.f32 %v303, %v345
        %v350 = vadd.f32 %v304, %v346
        %351 = vrot.lane.b32.xlu0 %v253, 15
        %v352 = vpop.permute.xlu0 %351
        %353 = vrot.lane.b32.xlu0 %v257, 15
        %v354 = vpop.permute.xlu0 %353
        %vm355 = vcmp.lt.s32.totalorder %v265, 15
        %v356 = vsel %vm355, %v352, %v354
        %v357 = vsel %vm355, %v354, %v352
        %s358 = scalar_lea.vmem %s0, 2
        %v359 = vld [vmem:[%s358] ss:$8 sm:$0x3]
        %v361 = vlaneseq
        %v362 = vshrl.u32 %v361, 7
        %v363 = vsub.s32 0, %v362
        %v364 = vrot.slane %v359, %v363
        %v365 = vlaneseq
        %v366 = vshrl.u32 %v365, 7
        %v367 = vsub.s32 1, %v366
        %v368 = vrot.slane %v359, %v367
        %v371 = vmul.f32 %v357, %v364
        %v372 = vmul.f32 %v356, %v368
        %373 = vset.pattern.permute.xlu0 2
        %374 = vperm.xlu0 %373, %v247
        %v375 = vpop.permute.xlu0 %374
        %377 = vset.pattern.permute.xlu0 2
        %378 = vperm.xlu0 %377, %v248
        %v379 = vpop.permute.xlu0 %378
        %v381 = vlaneseq
        %v382 = vshrl.u32 %v381, 7
        %v383 = vsub.s32 0, %v382
        %v384 = vrot.slane %v371, %v383
        %v385 = vlaneseq
        %v386 = vshrl.u32 %v385, 7
        %v387 = vsub.s32 0, %v386
        %v388 = vrot.slane %v372, %v387
        %v389 = vmul.f32 %v375, %v384
        %v390 = vmul.f32 %v375, %v388
        %v391 = vmul.f32 %v379, %v384
        %v392 = vmul.f32 %v379, %v388
        %v393 = vadd.f32 %v347, %v389
        %v394 = vadd.f32 %v348, %v390
        %v395 = vadd.f32 %v349, %v391
        %v396 = vadd.f32 %v350, %v392
        %397 = vrot.lane.b32.xlu0 %v253, 1
        %v398 = vpop.permute.xlu0 %397
        %399 = vrot.lane.b32.xlu0 %v257, 1
        %v400 = vpop.permute.xlu0 %399
        %vm401 = vcmp.lt.s32.totalorder %v265, 1
        %v402 = vsel %vm401, %v398, %v400
        %v403 = vsel %vm401, %v400, %v398
        %s404 = scalar_lea.vmem %s0, 3
        %v405 = vld [vmem:[%s404] ss:$8 sm:$0x3]
        %v407 = vlaneseq
        %v408 = vshrl.u32 %v407, 7
        %v409 = vsub.s32 0, %v408
        %v410 = vrot.slane %v405, %v409
        %v411 = vlaneseq
        %v412 = vshrl.u32 %v411, 7
        %v413 = vsub.s32 1, %v412
        %v414 = vrot.slane %v405, %v413
        %v417 = vmul.f32 %v403, %v410
        %v418 = vmul.f32 %v402, %v414
        %419 = vset.pattern.permute.xlu0 3
        %420 = vperm.xlu0 %419, %v247
        %v421 = vpop.permute.xlu0 %420
        %423 = vset.pattern.permute.xlu0 3
        %424 = vperm.xlu0 %423, %v248
        %v425 = vpop.permute.xlu0 %424
        %v427 = vlaneseq
        %v428 = vshrl.u32 %v427, 7
        %v429 = vsub.s32 0, %v428
        %v430 = vrot.slane %v417, %v429
        %v431 = vlaneseq
        %v432 = vshrl.u32 %v431, 7
        %v433 = vsub.s32 0, %v432
        %v434 = vrot.slane %v418, %v433
        %v435 = vmul.f32 %v421, %v430
        %v436 = vmul.f32 %v421, %v434
        %v437 = vmul.f32 %v425, %v430
        %v438 = vmul.f32 %v425, %v434
        %v439 = vadd.f32 %v393, %v435
        %v440 = vadd.f32 %v394, %v436
        %v441 = vadd.f32 %v395, %v437
        %v442 = vadd.f32 %v396, %v438
        %443 = vset.pattern.permute.xlu0 4
        %444 = vperm.xlu0 %443, %v247
        %v445 = vpop.permute.xlu0 %444
        %447 = vset.pattern.permute.xlu0 4
        %448 = vperm.xlu0 %447, %v248
        %v449 = vpop.permute.xlu0 %448
        %v451 = vmul.f32 %v445, %v253
        %v452 = vmul.f32 %v445, %v257
        %v453 = vmul.f32 %v449, %v253
        %v454 = vmul.f32 %v449, %v257
        %v455 = vadd.f32 %v439, %v451
        %v456 = vadd.f32 %v440, %v452
        %v457 = vadd.f32 %v441, %v453
        %v458 = vadd.f32 %v442, %v454
        %459 = vrot.lane.b32.xlu0 %v253, 127
        %v460 = vpop.permute.xlu0 %459
        %461 = vrot.lane.b32.xlu0 %v257, 127
        %v462 = vpop.permute.xlu0 %461
        %vm463 = vcmp.lt.s32.totalorder %v265, 127
        %v464 = vsel %vm463, %v460, %v462
        %v465 = vsel %vm463, %v462, %v460
        %s466 = scalar_lea.vmem %s0, 5
        %v467 = vld [vmem:[%s466] ss:$8 sm:$0x3]
        %v469 = vlaneseq
        %v470 = vshrl.u32 %v469, 7
        %v471 = vsub.s32 0, %v470
        %v472 = vrot.slane %v467, %v471
        %v473 = vlaneseq
        %v474 = vshrl.u32 %v473, 7
        %v475 = vsub.s32 1, %v474
        %v476 = vrot.slane %v467, %v475
        %v479 = vmul.f32 %v464, %v472
        %v480 = vmul.f32 %v465, %v476
        %481 = vset.pattern.permute.xlu0 5
        %482 = vperm.xlu0 %481, %v247
        %v483 = vpop.permute.xlu0 %482
        %485 = vset.pattern.permute.xlu0 5
        %486 = vperm.xlu0 %485, %v248
        %v487 = vpop.permute.xlu0 %486
        %v489 = vlaneseq
        %v490 = vshrl.u32 %v489, 7
        %v491 = vsub.s32 0, %v490
        %v492 = vrot.slane %v479, %v491
        %v493 = vlaneseq
        %v494 = vshrl.u32 %v493, 7
        %v495 = vsub.s32 0, %v494
        %v496 = vrot.slane %v480, %v495
        %v497 = vmul.f32 %v483, %v492
        %v498 = vmul.f32 %v483, %v496
        %v499 = vmul.f32 %v487, %v492
        %v500 = vmul.f32 %v487, %v496
        %v501 = vadd.f32 %v455, %v497
        %v502 = vadd.f32 %v456, %v498
        %v503 = vadd.f32 %v457, %v499
        %v504 = vadd.f32 %v458, %v500
        %505 = vrot.lane.b32.xlu0 %v253, 113
        %v506 = vpop.permute.xlu0 %505
        %507 = vrot.lane.b32.xlu0 %v257, 113
        %v508 = vpop.permute.xlu0 %507
        %vm509 = vcmp.lt.s32.totalorder %v265, 113
        %v510 = vsel %vm509, %v506, %v508
        %v511 = vsel %vm509, %v508, %v506
        %s512 = scalar_lea.vmem %s0, 6
        %v513 = vld [vmem:[%s512] ss:$8 sm:$0x3]
        %v515 = vlaneseq
        %v516 = vshrl.u32 %v515, 7
        %v517 = vsub.s32 0, %v516
        %v518 = vrot.slane %v513, %v517
        %v519 = vlaneseq
        %v520 = vshrl.u32 %v519, 7
        %v521 = vsub.s32 1, %v520
        %v522 = vrot.slane %v513, %v521
        %v525 = vmul.f32 %v510, %v518
        %v526 = vmul.f32 %v511, %v522
        %527 = vset.pattern.permute.xlu0 6
        %528 = vperm.xlu0 %527, %v247
        %v529 = vpop.permute.xlu0 %528
        %531 = vset.pattern.permute.xlu0 6
        %532 = vperm.xlu0 %531, %v248
        %v533 = vpop.permute.xlu0 %532
        %v535 = vlaneseq
        %v536 = vshrl.u32 %v535, 7
        %v537 = vsub.s32 0, %v536
        %v538 = vrot.slane %v525, %v537
        %v539 = vlaneseq
        %v540 = vshrl.u32 %v539, 7
        %v541 = vsub.s32 0, %v540
        %v542 = vrot.slane %v526, %v541
        %v543 = vmul.f32 %v529, %v538
        %v544 = vmul.f32 %v529, %v542
        %v545 = vmul.f32 %v533, %v538
        %v546 = vmul.f32 %v533, %v542
        %v547 = vadd.f32 %v501, %v543
        %v548 = vadd.f32 %v502, %v544
        %v549 = vadd.f32 %v503, %v545
        %v550 = vadd.f32 %v504, %v546
        %551 = vrot.lane.b32.xlu0 %v253, 112
        %v552 = vpop.permute.xlu0 %551
        %553 = vrot.lane.b32.xlu0 %v257, 112
        %v554 = vpop.permute.xlu0 %553
        %vm555 = vcmp.lt.s32.totalorder %v265, 112
        %v556 = vsel %vm555, %v552, %v554
        %v557 = vsel %vm555, %v554, %v552
        %s558 = scalar_lea.vmem %s0, 7
        %v559 = vld [vmem:[%s558] ss:$8 sm:$0x3]
        %v561 = vlaneseq
        %v562 = vshrl.u32 %v561, 7
        %v563 = vsub.s32 0, %v562
        %v564 = vrot.slane %v559, %v563
        %v565 = vlaneseq
        %v566 = vshrl.u32 %v565, 7
        %v567 = vsub.s32 1, %v566
        %v568 = vrot.slane %v559, %v567
        %v571 = vmul.f32 %v556, %v564
        %v572 = vmul.f32 %v557, %v568
        %573 = vset.pattern.permute.xlu0 7
        %574 = vperm.xlu0 %573, %v247
        %v575 = vpop.permute.xlu0 %574
        %577 = vset.pattern.permute.xlu0 7
        %578 = vperm.xlu0 %577, %v248
        %v579 = vpop.permute.xlu0 %578
        %v581 = vlaneseq
        %v582 = vshrl.u32 %v581, 7
        %v583 = vsub.s32 0, %v582
        %v584 = vrot.slane %v571, %v583
        %v585 = vlaneseq
        %v586 = vshrl.u32 %v585, 7
        %v587 = vsub.s32 0, %v586
        %v588 = vrot.slane %v572, %v587
        %v589 = vmul.f32 %v575, %v584
        %v590 = vmul.f32 %v575, %v588
        %v591 = vmul.f32 %v579, %v584
        %v592 = vmul.f32 %v579, %v588
        %v593 = vadd.f32 %v547, %v589
        %v594 = vadd.f32 %v548, %v590
        %v595 = vadd.f32 %v549, %v591
        %v596 = vadd.f32 %v550, %v592
        %597 = vrot.lane.b32.xlu0 %v253, 111
        %v598 = vpop.permute.xlu0 %597
        %599 = vrot.lane.b32.xlu0 %v257, 111
        %v600 = vpop.permute.xlu0 %599
        %vm601 = vcmp.lt.s32.totalorder %v265, 111
        %v602 = vsel %vm601, %v598, %v600
        %v603 = vsel %vm601, %v600, %v598
        %s604 = scalar_lea.vmem %s0, 16
        %v605 = vld [vmem:[%s604] ss:$8 sm:$0x3]
        %v607 = vlaneseq
        %v608 = vshrl.u32 %v607, 7
        %v609 = vsub.s32 0, %v608
        %v610 = vrot.slane %v605, %v609
        %v611 = vlaneseq
        %v612 = vshrl.u32 %v611, 7
        %v613 = vsub.s32 1, %v612
        %v614 = vrot.slane %v605, %v613
        %v617 = vmul.f32 %v602, %v610
        %v618 = vmul.f32 %v603, %v614
        %619 = vset.pattern.permute.xlu0 8
        %620 = vperm.xlu0 %619, %v247
        %v621 = vpop.permute.xlu0 %620
        %623 = vset.pattern.permute.xlu0 8
        %624 = vperm.xlu0 %623, %v248
        %v625 = vpop.permute.xlu0 %624
        %v627 = vlaneseq
        %v628 = vshrl.u32 %v627, 7
        %v629 = vsub.s32 0, %v628
        %v630 = vrot.slane %v617, %v629
        %v631 = vlaneseq
        %v632 = vshrl.u32 %v631, 7
        %v633 = vsub.s32 0, %v632
        %v634 = vrot.slane %v618, %v633
        %v635 = vmul.f32 %v621, %v630
        %v636 = vmul.f32 %v621, %v634
        %v637 = vmul.f32 %v625, %v630
        %v638 = vmul.f32 %v625, %v634
        %v639 = vadd.f32 %v593, %v635
        %v640 = vadd.f32 %v594, %v636
        %v641 = vadd.f32 %v595, %v637
        %v642 = vadd.f32 %v596, %v638
        %v643 = vld [vmem:[%s3] sm:$0xff]
        %v644 = vld [vmem:[%s3 + $0x8] sm:$0xff]
        %646 = vset.pattern.permute.xlu0 0
        %647 = vperm.xlu0 %646, %v643
        %v648 = vpop.permute.xlu0 %647
        %651 = vset.pattern.permute.xlu0 0
        %652 = vperm.xlu0 %651, %v644
        %v653 = vpop.permute.xlu0 %652
        %v655 = vadd.f32 %v639, %v648
        %v656 = vadd.f32 %v640, %v648
        %v657 = vadd.f32 %v641, %v653
        %v658 = vadd.f32 %v642, %v653
        %v659 = vmax.f32 %v655, 0.0
        %v660 = vmax.f32 %v656, 0.0
        %v661 = vmax.f32 %v657, 0.0
        %v662 = vmax.f32 %v658, 0.0
        %663 = vrot.lane.b32.xlu0 %v659, 17
        %v664 = vpop.permute.xlu0 %663
        %665 = vrot.lane.b32.xlu0 %v661, 17
        %v666 = vpop.permute.xlu0 %665
        %667 = vrot.lane.b32.xlu0 %v660, 17
        %v668 = vpop.permute.xlu0 %667
        %669 = vrot.lane.b32.xlu0 %v662, 17
        %v670 = vpop.permute.xlu0 %669
        %v671 = vsel %vm266, %v664, %v668
        %v672 = vsel %vm266, %v666, %v670
        %v673 = vsel %vm266, %v668, %v664
        %v674 = vsel %vm266, %v670, %v666
        %v675 = vmul.f32 %v673, %v274
        %v676 = vmul.f32 %v671, %v278
        %v677 = vmul.f32 %v674, %v274
        %v678 = vmul.f32 %v672, %v278
        %679 = vst [vmem:[#allocation2] sm:$0xff] %v675
        %680 = vst [vmem:[#allocation2 + $0x8] sm:$0xff] %v676
        %681 = vst [vmem:[#allocation2 + $0x10] sm:$0xff] %v677
        %682 = vst [vmem:[#allocation2 + $0x18] sm:$0xff] %v678
        %683 = vrot.lane.b32.xlu0 %v659, 16
        %v684 = vpop.permute.xlu0 %683
        %685 = vrot.lane.b32.xlu0 %v661, 16
        %v686 = vpop.permute.xlu0 %685
        %687 = vrot.lane.b32.xlu0 %v660, 16
        %v688 = vpop.permute.xlu0 %687
        %689 = vrot.lane.b32.xlu0 %v662, 16
        %v690 = vpop.permute.xlu0 %689
        %v691 = vsel %vm309, %v684, %v688
        %v692 = vsel %vm309, %v686, %v690
        %v693 = vsel %vm309, %v688, %v684
        %v694 = vsel %vm309, %v690, %v686
        %v695 = vld [vmem:[%s312] ss:$8 sm:$0x3]
        %v697 = vlaneseq
        %v698 = vshrl.u32 %v697, 7
        %v699 = vsub.s32 0, %v698
        %v700 = vrot.slane %v695, %v699
        %v701 = vlaneseq
        %v702 = vshrl.u32 %v701, 7
        %v703 = vsub.s32 1, %v702
        %v704 = vrot.slane %v695, %v703
        %v707 = vmul.f32 %v693, %v700
        %v708 = vmul.f32 %v691, %v704
        %v709 = vmul.f32 %v694, %v700
        %v710 = vmul.f32 %v692, %v704
        %711 = vst [vmem:[#allocation2 + $0x20] sm:$0xff] %v707
        %712 = vst [vmem:[#allocation2 + $0x28] sm:$0xff] %v708
        %713 = vst [vmem:[#allocation2 + $0x30] sm:$0xff] %v709
        %714 = vst [vmem:[#allocation2 + $0x38] sm:$0xff] %v710
        %715 = vrot.lane.b32.xlu0 %v659, 15
        %v716 = vpop.permute.xlu0 %715
        %717 = vrot.lane.b32.xlu0 %v661, 15
        %v718 = vpop.permute.xlu0 %717
        %719 = vrot.lane.b32.xlu0 %v660, 15
        %v720 = vpop.permute.xlu0 %719
        %721 = vrot.lane.b32.xlu0 %v662, 15
        %v722 = vpop.permute.xlu0 %721
        %v723 = vsel %vm355, %v716, %v720
        %v724 = vsel %vm355, %v718, %v722
        %v725 = vsel %vm355, %v720, %v716
        %v726 = vsel %vm355, %v722, %v718
        %v727 = vld [vmem:[%s358] ss:$8 sm:$0x3]
        %v729 = vlaneseq
        %v730 = vshrl.u32 %v729, 7
        %v731 = vsub.s32 0, %v730
        %v732 = vrot.slane %v727, %v731
        %v733 = vlaneseq
        %v734 = vshrl.u32 %v733, 7
        %v735 = vsub.s32 1, %v734
        %v736 = vrot.slane %v727, %v735
        %v739 = vmul.f32 %v725, %v732
        %v740 = vmul.f32 %v723, %v736
        %v741 = vmul.f32 %v726, %v732
        %v742 = vmul.f32 %v724, %v736
        %743 = vst [vmem:[#allocation2 + $0x40] sm:$0xff] %v739
        %744 = vst [vmem:[#allocation2 + $0x48] sm:$0xff] %v740
        %745 = vst [vmem:[#allocation2 + $0x50] sm:$0xff] %v741
        %746 = vst [vmem:[#allocation2 + $0x58] sm:$0xff] %v742
        %747 = vrot.lane.b32.xlu0 %v659, 1
        %v748 = vpop.permute.xlu0 %747
        %749 = vrot.lane.b32.xlu0 %v661, 1
        %v750 = vpop.permute.xlu0 %749
        %751 = vrot.lane.b32.xlu0 %v660, 1
        %v752 = vpop.permute.xlu0 %751
        %753 = vrot.lane.b32.xlu0 %v662, 1
        %v754 = vpop.permute.xlu0 %753
        %v755 = vsel %vm401, %v748, %v752
        %v756 = vsel %vm401, %v750, %v754
        %v757 = vsel %vm401, %v752, %v748
        %v758 = vsel %vm401, %v754, %v750
        %v759 = vld [vmem:[%s404] ss:$8 sm:$0x3]
        %v761 = vlaneseq
        %v762 = vshrl.u32 %v761, 7
        %v763 = vsub.s32 0, %v762
        %v764 = vrot.slane %v759, %v763
        %v765 = vlaneseq
        %v766 = vshrl.u32 %v765, 7
        %v767 = vsub.s32 1, %v766
        %v768 = vrot.slane %v759, %v767
        %v771 = vmul.f32 %v757, %v764
        %v772 = vmul.f32 %v755, %v768
        %v773 = vmul.f32 %v758, %v764
        %v774 = vmul.f32 %v756, %v768
        %775 = vst [vmem:[#allocation2 + $0x60] sm:$0xff] %v771
        %776 = vst [vmem:[#allocation2 + $0x68] sm:$0xff] %v772
        %777 = vst [vmem:[#allocation2 + $0x70] sm:$0xff] %v773
        %778 = vst [vmem:[#allocation2 + $0x78] sm:$0xff] %v774
        %779 = vst [vmem:[#allocation2 + $0x80] sm:$0xff] %v659
        %780 = vst [vmem:[#allocation2 + $0x88] sm:$0xff] %v660
        %781 = vst [vmem:[#allocation2 + $0x90] sm:$0xff] %v661
        %782 = vst [vmem:[#allocation2 + $0x98] sm:$0xff] %v662
        %783 = vrot.lane.b32.xlu0 %v659, 127
        %v784 = vpop.permute.xlu0 %783
        %785 = vrot.lane.b32.xlu0 %v661, 127
        %v786 = vpop.permute.xlu0 %785
        %787 = vrot.lane.b32.xlu0 %v660, 127
        %v788 = vpop.permute.xlu0 %787
        %789 = vrot.lane.b32.xlu0 %v662, 127
        %v790 = vpop.permute.xlu0 %789
        %v791 = vsel %vm463, %v784, %v788
        %v792 = vsel %vm463, %v786, %v790
        %v793 = vsel %vm463, %v788, %v784
        %v794 = vsel %vm463, %v790, %v786
        %v795 = vld [vmem:[%s466] ss:$8 sm:$0x3]
        %v797 = vlaneseq
        %v798 = vshrl.u32 %v797, 7
        %v799 = vsub.s32 0, %v798
        %v800 = vrot.slane %v795, %v799
        %v801 = vlaneseq
        %v802 = vshrl.u32 %v801, 7
        %v803 = vsub.s32 1, %v802
        %v804 = vrot.slane %v795, %v803
        %v807 = vmul.f32 %v791, %v800
        %v808 = vmul.f32 %v793, %v804
        %v809 = vmul.f32 %v792, %v800
        %v810 = vmul.f32 %v794, %v804
        %811 = vst [vmem:[#allocation2 + $0xa0] sm:$0xff] %v807
        %812 = vst [vmem:[#allocation2 + $0xa8] sm:$0xff] %v808
        %813 = vst [vmem:[#allocation2 + $0xb0] sm:$0xff] %v809
        %814 = vst [vmem:[#allocation2 + $0xb8] sm:$0xff] %v810
        %815 = vrot.lane.b32.xlu0 %v659, 113
        %v816 = vpop.permute.xlu0 %815
        %817 = vrot.lane.b32.xlu0 %v661, 113
        %v818 = vpop.permute.xlu0 %817
        %819 = vrot.lane.b32.xlu0 %v660, 113
        %v820 = vpop.permute.xlu0 %819
        %821 = vrot.lane.b32.xlu0 %v662, 113
        %v822 = vpop.permute.xlu0 %821
        %v823 = vsel %vm509, %v816, %v820
        %v824 = vsel %vm509, %v818, %v822
        %v825 = vsel %vm509, %v820, %v816
        %v826 = vsel %vm509, %v822, %v818
        %v827 = vld [vmem:[%s512] ss:$8 sm:$0x3]
        %v829 = vlaneseq
        %v830 = vshrl.u32 %v829, 7
        %v831 = vsub.s32 0, %v830
        %v832 = vrot.slane %v827, %v831
        %v833 = vlaneseq
        %v834 = vshrl.u32 %v833, 7
        %v835 = vsub.s32 1, %v834
        %v836 = vrot.slane %v827, %v835
        %v839 = vmul.f32 %v823, %v832
        %v840 = vmul.f32 %v825, %v836
        %v841 = vmul.f32 %v824, %v832
        %v842 = vmul.f32 %v826, %v836
        %843 = vst [vmem:[#allocation2 + $0xc0] sm:$0xff] %v839
        %844 = vst [vmem:[#allocation2 + $0xc8] sm:$0xff] %v840
        %845 = vst [vmem:[#allocation2 + $0xd0] sm:$0xff] %v841
        %846 = vst [vmem:[#allocation2 + $0xd8] sm:$0xff] %v842
        %847 = vrot.lane.b32.xlu0 %v659, 112
        %v848 = vpop.permute.xlu0 %847
        %849 = vrot.lane.b32.xlu0 %v661, 112
        %v850 = vpop.permute.xlu0 %849
        %851 = vrot.lane.b32.xlu0 %v660, 112
        %v852 = vpop.permute.xlu0 %851
        %853 = vrot.lane.b32.xlu0 %v662, 112
        %v854 = vpop.permute.xlu0 %853
        %v855 = vsel %vm555, %v848, %v852
        %v856 = vsel %vm555, %v850, %v854
        %v857 = vsel %vm555, %v852, %v848
        %v858 = vsel %vm555, %v854, %v850
        %v859 = vld [vmem:[%s558] ss:$8 sm:$0x3]
        %v861 = vlaneseq
        %v862 = vshrl.u32 %v861, 7
        %v863 = vsub.s32 0, %v862
        %v864 = vrot.slane %v859, %v863
        %v865 = vlaneseq
        %v866 = vshrl.u32 %v865, 7
        %v867 = vsub.s32 1, %v866
        %v868 = vrot.slane %v859, %v867
        %v871 = vmul.f32 %v855, %v864
        %v872 = vmul.f32 %v857, %v868
        %v873 = vmul.f32 %v856, %v864
        %v874 = vmul.f32 %v858, %v868
        %875 = vst [vmem:[#allocation2 + $0xe0] sm:$0xff] %v871
        %876 = vst [vmem:[#allocation2 + $0xe8] sm:$0xff] %v872
        %877 = vst [vmem:[#allocation2 + $0xf0] sm:$0xff] %v873
        %878 = vst [vmem:[#allocation2 + $0xf8] sm:$0xff] %v874
        %879 = vrot.lane.b32.xlu0 %v659, 111
        %v880 = vpop.permute.xlu0 %879
        %881 = vrot.lane.b32.xlu0 %v661, 111
        %v882 = vpop.permute.xlu0 %881
        %883 = vrot.lane.b32.xlu0 %v660, 111
        %v884 = vpop.permute.xlu0 %883
        %885 = vrot.lane.b32.xlu0 %v662, 111
        %v886 = vpop.permute.xlu0 %885
        %v887 = vsel %vm601, %v880, %v884
        %v888 = vsel %vm601, %v882, %v886
        %v889 = vsel %vm601, %v884, %v880
        %v890 = vsel %vm601, %v886, %v882
        %v891 = vld [vmem:[%s604] ss:$8 sm:$0x3]
        %v893 = vlaneseq
        %v894 = vshrl.u32 %v893, 7
        %v895 = vsub.s32 0, %v894
        %v896 = vrot.slane %v891, %v895
        %v897 = vlaneseq
        %v898 = vshrl.u32 %v897, 7
        %v899 = vsub.s32 1, %v898
        %v900 = vrot.slane %v891, %v899
        %v903 = vmul.f32 %v887, %v896
        %v904 = vmul.f32 %v889, %v900
        %v905 = vmul.f32 %v888, %v896
        %v906 = vmul.f32 %v890, %v900
        %907 = vst [vmem:[#allocation2 + $0x100] sm:$0xff] %v903
        %908 = vst [vmem:[#allocation2 + $0x108] sm:$0xff] %v904
        %909 = vst [vmem:[#allocation2 + $0x110] sm:$0xff] %v905
        %910 = vst [vmem:[#allocation2 + $0x118] sm:$0xff] %v906
        %v911 = vld [vmem:[%s4] sm:$0xff]
        %v912 = vld [vmem:[%s4 + $0x8] sm:$0xff]
        %v913 = vld [vmem:[%s4 + $0x10] sm:$0xff]
        %v914 = vld [vmem:[%s4 + $0x18] sm:$0xff]
        %v915 = vld [vmem:[%s4 + $0x20] sm:$0xff]
        %v916 = vld [vmem:[%s4 + $0x28] sm:$0xff]
        %v917 = vld [vmem:[%s4 + $0x30] sm:$0xff]
        %v918 = vld [vmem:[%s4 + $0x38] sm:$0xff]
        %v919 = vld [vmem:[#allocation2] sm:$0xff]
        %v920 = vld [vmem:[#allocation2 + $0x8] sm:$0xff]
        %v921 = vld [vmem:[#allocation2 + $0x10] sm:$0xff]
        %v922 = vld [vmem:[#allocation2 + $0x18] sm:$0xff]
        %v923 = vld [vmem:[#allocation2 + $0x20] sm:$0xff]
        %v924 = vld [vmem:[#allocation2 + $0x28] sm:$0xff]
        %v925 = vld [vmem:[#allocation2 + $0x30] sm:$0xff]
        %v926 = vld [vmem:[#allocation2 + $0x38] sm:$0xff]
        %v927 = vld [vmem:[#allocation2 + $0x40] sm:$0xff]
        %v928 = vld [vmem:[#allocation2 + $0x48] sm:$0xff]
        %v929 = vld [vmem:[#allocation2 + $0x50] sm:$0xff]
        %v930 = vld [vmem:[#allocation2 + $0x58] sm:$0xff]
        %v931 = vld [vmem:[#allocation2 + $0x60] sm:$0xff]
        %v932 = vld [vmem:[#allocation2 + $0x68] sm:$0xff]
        %v933 = vld [vmem:[#allocation2 + $0x70] sm:$0xff]
        %v934 = vld [vmem:[#allocation2 + $0x78] sm:$0xff]
        %v935 = vld [vmem:[#allocation2 + $0x80] sm:$0xff]
        %v936 = vld [vmem:[#allocation2 + $0x88] sm:$0xff]
        %v937 = vld [vmem:[#allocation2 + $0x90] sm:$0xff]
        %v938 = vld [vmem:[#allocation2 + $0x98] sm:$0xff]
        %v939 = vld [vmem:[#allocation2 + $0xa0] sm:$0xff]
        %v940 = vld [vmem:[#allocation2 + $0xa8] sm:$0xff]
        %v941 = vld [vmem:[#allocation2 + $0xb0] sm:$0xff]
        %v942 = vld [vmem:[#allocation2 + $0xb8] sm:$0xff]
        %v943 = vld [vmem:[#allocation2 + $0xc0] sm:$0xff]
        %v944 = vld [vmem:[#allocation2 + $0xc8] sm:$0xff]
        %v945 = vld [vmem:[#allocation2 + $0xd0] sm:$0xff]
        %v946 = vld [vmem:[#allocation2 + $0xd8] sm:$0xff]
        %v947 = vld [vmem:[#allocation2 + $0xe0] sm:$0xff]
        %v948 = vld [vmem:[#allocation2 + $0xe8] sm:$0xff]
        %v949 = vld [vmem:[#allocation2 + $0xf0] sm:$0xff]
        %v950 = vld [vmem:[#allocation2 + $0xf8] sm:$0xff]
        %v951 = vld [vmem:[#allocation2 + $0x100] sm:$0xff]
        %v952 = vld [vmem:[#allocation2 + $0x108] sm:$0xff]
        %v953 = vld [vmem:[#allocation2 + $0x110] sm:$0xff]
        %v954 = vld [vmem:[#allocation2 + $0x118] sm:$0xff]
        %v955 = vld [vmem:[%s5] sm:$0xff]
        %v956 = vld [vmem:[%s5 + $0x8] sm:$0xff]
        %v957 = vld [vmem:[%s5 + $0x10] sm:$0xff]
        %v958 = vld [vmem:[%s5 + $0x18] sm:$0xff]
        %960 = vset.pattern.permute.xlu0 0
        %961 = vperm.xlu0 %960, %v955
        %v962 = vpop.permute.xlu0 %961
        %965 = vset.pattern.permute.xlu0 0
        %966 = vperm.xlu0 %965, %v956
        %v967 = vpop.permute.xlu0 %966
        %970 = vset.pattern.permute.xlu0 0
        %971 = vperm.xlu0 %970, %v957
        %v972 = vpop.permute.xlu0 %971
        %975 = vset.pattern.permute.xlu0 0
        %976 = vperm.xlu0 %975, %v958
        %v977 = vpop.permute.xlu0 %976
        %vm979 = vcmask 130048
        %v981 = vsel %vm979, %v912, 0
        %v984 = vsel %vm979, %v914, 0
        %v987 = vsel %vm979, %v916, 0
        %v990 = vsel %vm979, %v918, 0
        %992 = vmatprep.subr.mxu0 %v920
        %993 = vmatpush1.msra.mxu0 %v919
        %994 = vmatprep.subr.mxu0 %v922
        %995 = vmatpush1.msra.mxu0 %v921
        %996 = vmatprep.subr.mxu0 %v924
        %997 = vmatpush1.msra.mxu0 %v923
        %998 = vmatprep.subr.mxu0 %v926
        %999 = vmatpush1.msra.mxu0 %v925
        %1000 = vmatprep.subr.mxu0 %v928
        %1001 = vmatpush1.msra.mxu0 %v927
        %1002 = vmatprep.subr.mxu0 %v930
        %1003 = vmatpush1.msra.mxu0 %v929
        %1004 = vmatprep.subr.mxu0 %v932
        %1005 = vmatpush1.msra.mxu0 %v931
        %1006 = vmatprep.subr.mxu0 %v934
        %1007 = vmatpush1.msra.mxu0 %v933
        %1008 = vmatprep.subr.mxu0 %v936
        %1009 = vmatpush1.msra.mxu0 %v935
        %1010 = vmatprep.subr.mxu0 %v938
        %1011 = vmatpush1.msra.mxu0 %v937
        %1012 = vmatprep.subr.mxu0 %v940
        %1013 = vmatpush1.msra.mxu0 %v939
        %1014 = vmatprep.subr.mxu0 %v942
        %1015 = vmatpush1.msra.mxu0 %v941
        %1016 = vmatprep.subr.mxu0 %v944
        %1017 = vmatpush1.msra.mxu0 %v943
        %1018 = vmatprep.subr.mxu0 %v946
        %1019 = vmatpush1.msra.mxu0 %v945
        %1020 = vmatprep.subr.mxu0 %v948
        %1021 = vmatpush1.msra.mxu0 %v947
        %1022 = vmatprep.subr.mxu0 %v950
        %1023 = vmatpush1.msra.mxu0 %v949
        %1024 = vmatprep.subr.mxu0 %v952
        %1025 = vmatpush1.msra.mxu0 %v951
        %1026 = vmatprep.subr.mxu0 %v954
        %1027 = vmatpush1.msra.mxu0 %v953
        %1028 = vmatprep.subr.mxu0 0.0
        %1029 = vmatpush1.msra.mxu0 0.0
        %1030 = vmatprep.subr.mxu0 0.0
        %1031 = vmatpush1.msra.mxu0 0.0
        %1032 = vmatprep.subr.mxu0 0.0
        %1033 = vmatpush1.msra.mxu0 0.0
        %1034 = vmatprep.subr.mxu0 0.0
        %1035 = vmatpush1.msra.mxu0 0.0
        %1036 = vmatprep.subr.mxu0 0.0
        %1037 = vmatpush1.msra.mxu0 0.0
        %1038 = vmatprep.subr.mxu0 0.0
        %1039 = vmatpush1.msra.mxu0 0.0
        %1040 = vmatprep.subr.mxu0 0.0
        %1041 = vmatpush1.msra.mxu0 0.0
        %1042 = vmatprep.subr.mxu0 0.0
        %1043 = vmatpush1.msra.mxu0 0.0
        %1044 = vmatprep.subr.mxu0 0.0
        %1045 = vmatpush1.msra.mxu0 0.0
        %1046 = vmatprep.subr.mxu0 0.0
        %1047 = vmatpush1.msra.mxu0 0.0
        %1048 = vmatprep.subr.mxu0 0.0
        %1049 = vmatpush1.msra.mxu0 0.0
        %1050 = vmatprep.subr.mxu0 0.0
        %1051 = vmatpush1.msra.mxu0 0.0
        %1052 = vmatprep.subr.mxu0 0.0
        %1053 = vmatpush1.msra.mxu0 0.0
        %1054 = vmatprep.subr.mxu0 0.0
        %1055 = vmatpush1.msra.mxu0 0.0
        %1056 = vmatprep.mubr.f32.mxu0 %v981
        %1057 = vmatmul.mubr.f32.gmra.mrb[0].mxu0 %v911
        %v1058 = vpop.f32.mrb[0].mxu0
        %v1059 = vadd.f32 %v962, %v1058
        %v1060 = vpop.f32.mrb[0].mxu0
        %v1061 = vadd.f32 %v962, %v1060
        %1062 = vmatprep.mubr.f32.mxu0 %v984
        %1063 = vmatmul.mubr.f32.gmra.mrb[0].mxu0 %v913
        %v1064 = vpop.f32.mrb[0].mxu0
        %v1065 = vadd.f32 %v967, %v1064
        %v1066 = vpop.f32.mrb[0].mxu0
        %v1067 = vadd.f32 %v967, %v1066
        %1068 = vmatprep.mubr.f32.mxu0 %v987
        %1069 = vmatmul.mubr.f32.gmra.mrb[0].mxu0 %v915
        %v1070 = vpop.f32.mrb[0].mxu0
        %v1071 = vadd.f32 %v972, %v1070
        %v1072 = vpop.f32.mrb[0].mxu0
        %v1073 = vadd.f32 %v972, %v1072
        %1074 = vmatprep.mubr.f32.mxu0 %v990
        %1075 = vmatmul.mubr.f32.gmra.mrb[0].mxu0 %v917
        %v1076 = vpop.f32.mrb[0].mxu0
        %v1077 = vadd.f32 %v977, %v1076
        %v1078 = vpop.f32.mrb[0].mxu0
        %v1079 = vadd.f32 %v977, %v1078
        %1080 = vdwg.mxu0
        %v1081 = vmax.f32 %v1059, 0.0
        %v1082 = vmax.f32 %v1061, 0.0
        %v1083 = vmax.f32 %v1065, 0.0
        %v1084 = vmax.f32 %v1067, 0.0
        %v1085 = vmax.f32 %v1071, 0.0
        %v1086 = vmax.f32 %v1073, 0.0
        %v1087 = vmax.f32 %v1077, 0.0
        %v1088 = vmax.f32 %v1079, 0.0
        %1089 = vst [vmem:[%s239] sm:$0xff] %v1081
        %1090 = vst [vmem:[%s239 + $0x8] sm:$0xff] %v1082
        %1091 = vst [vmem:[%s239 + $0x10] sm:$0xff] %v1083
        %1092 = vst [vmem:[%s239 + $0x18] sm:$0xff] %v1084
        %1093 = vst [vmem:[%s239 + $0x20] sm:$0xff] %v1085
        %1094 = vst [vmem:[%s239 + $0x28] sm:$0xff] %v1086
        %1095 = vst [vmem:[%s239 + $0x30] sm:$0xff] %v1087
        %1096 = vst [vmem:[%s239 + $0x38] sm:$0xff] %v1088
        %s1097 = sand.u32 %s156, 1
        %s1098 = sand.u32 %s156, 1
        %s1099 = smul.addr %s1098, 64
        %s1100 = scalar_lea.vmem [#allocation3], %s1099
        // Predicated region
        $region45: #{_fused_forward.1} parent=43 // pred_check
          %p1101 = pneg %p166
        $region46: #{_fused_forward.1} parent=43 // pred_check_branch
          %1103 = sbr.rel (%p1101) target = $region48
        $region47: #{_fused_forward.1} parent=43 // pred_region
          %s1104 = smul.u32 2, %s17
          %s1105 = smul.addr %s1104, 8
          %s1106 = scalar_lea.vmem %s6, %s1105
          // Predicated region
          $region49: #{_fused_forward.1} parent=47 // pred_check
            _
          $region50: #{_fused_forward.1} parent=47 // pred_check_branch
            %1108 = sbr.rel (0) target = $region52
          $region51: #{_fused_forward.1} parent=47 // pred_region
            // Predicated region
            $region53: #{_fused_forward.1} parent=51 // pred_check
              _
            $region54: #{_fused_forward.1} parent=51 // pred_check_branch
              %1110 = sbr.rel (0) target = $region56
            $region55: #{_fused_forward.1} parent=51 // pred_region
              loop: start=0, step=1, limit=1
              $region57: #{_fused_forward.1} parent=55 // loop_pre_header
                _
              $region58: #{_fused_forward.1} parent=55 // loop_header
                %s1112 = sphi 0, %s1116
                %p1113 = scmp.ge.s32.totalorder %s1112, 1
                %s1117 = sphi %s1100, %s1100
                %s1118 = sphi %s1106, %s1106
              $region59: #{_fused_forward.1} parent=55 // loop_header_branch
                %1115 = sbr.rel (%p1113) target = $region63
              $region60: #{_fused_forward.1} parent=55 // loop_body
                %v1119 = vld [vmem:[%s1117] sm:$0xff]
                %1120 = vst [vmem:[%s1118] sm:$0xff] %v1119
                %v1121 = vld [vmem:[%s1117 + $0x8] sm:$0xff]
                %1122 = vst [vmem:[%s1118 + $0x8] sm:$0xff] %v1121
                %v1123 = vld [vmem:[%s1117 + $0x10] sm:$0xff]
                %1124 = vst [vmem:[%s1118 + $0x20] sm:$0xff] %v1123
                %v1125 = vld [vmem:[%s1117 + $0x18] sm:$0xff]
                %1126 = vst [vmem:[%s1118 + $0x28] sm:$0xff] %v1125
                %v1127 = vld [vmem:[%s1117 + $0x20] sm:$0xff]
                %1128 = vst [vmem:[%s1118 + $0x40] sm:$0xff] %v1127
                %v1129 = vld [vmem:[%s1117 + $0x28] sm:$0xff]
                %1130 = vst [vmem:[%s1118 + $0x48] sm:$0xff] %v1129
                %v1131 = vld [vmem:[%s1117 + $0x30] sm:$0xff]
                %1132 = vst [vmem:[%s1118 + $0x60] sm:$0xff] %v1131
                %v1133 = vld [vmem:[%s1117 + $0x38] sm:$0xff]
                %1134 = vst [vmem:[%s1118 + $0x68] sm:$0xff] %v1133
              $region61: #{_fused_forward.1} parent=55 // loop_footer
                %s1116 = sadd.s32 1, %s1112
              $region62: #{_fused_forward.1} parent=55 // loop_footer_branch
                %1111 = sbr.rel target = $region58
              $region63: #{_fused_forward.1} parent=55 // loop_exit
                _
            $region56: #{_fused_forward.1} parent=51 // pred_fallthru
              _
            // Predicated region
            $region64: #{_fused_forward.1} parent=51 // pred_check
              _
            $region65: #{_fused_forward.1} parent=51 // pred_check_branch
              %1136 = sbr.rel target = $region67
            $region66: #{_fused_forward.1} parent=51 // pred_region
              _
            $region67: #{_fused_forward.1} parent=51 // pred_fallthru
              _
          $region52: #{_fused_forward.1} parent=47 // pred_fallthru
            _
          %1137 = vnop
        $region48: #{_fused_forward.1} parent=43 // pred_fallthru
          _
      $region44: #{_fused_forward.1} parent=5 // pred_fallthru
        _
      %p1138 = scmp.le.s32.totalorder 2, %s12
      // Predicated region
      $region68: #{_fused_forward.1} parent=5 // pred_check
        %p1139 = pneg %p1138
      $region69: #{_fused_forward.1} parent=5 // pred_check_branch
        %1141 = sbr.rel (%p1139) target = $region71
      $region70: #{_fused_forward.1} parent=5 // pred_region
        %s1142 = ssub.s32 %s12, 2
        // Predicated region
        $region72: #{_fused_forward.1} parent=70 // pred_check
          %p1143 = pneg %p172
        $region73: #{_fused_forward.1} parent=70 // pred_check_branch
          %1145 = sbr.rel (%p1143) target = $region75
        $region74: #{_fused_forward.1} parent=70 // pred_region
          %s1146 = sand.u32 %s157, 1
          %s1147 = sand.u32 %s157, 1
          %s1148 = smul.addr %s1147, 64
          %s1149 = scalar_lea.vmem [#allocation3], %s1148
        $region75: #{_fused_forward.1} parent=70 // pred_fallthru
          _
      $region71: #{_fused_forward.1} parent=5 // pred_fallthru
        _
    $region6: #{_fused_forward.1} parent=1 // loop_footer
      %s16 = sadd.s32 1, %s12
    $region7: #{_fused_forward.1} parent=1 // loop_footer_branch
      %11 = sbr.rel target = $region3
    $region8: #{_fused_forward.1} parent=1 // loop_exit
      _

</llo_original>
